<compile_context>
chip_gen: v7x
topology: tpu7x:2x2x1
jax: 0.10.0
libtpu: 0.0.40
codegen_flags: <defaults>
</compile_context>

<pallas_src>
import functools

import jax
import jax.numpy as jnp
from jax.experimental import pallas as pl
from jax.experimental.pallas import tpu as pltpu


_LANE = 512  # lane-dense last dim for the flattened MSE pass (multiple of 128)


# ---------------------------------------------------------------------------
# tiling helpers
# ---------------------------------------------------------------------------
def _round_up(x, m):
    return ((x + m - 1) // m) * m


def _plan_tiles(total, itemsizes):
    """Row tiling for the flattened (rows, _LANE) MSE layout.

    Returns (tr, padded_rows, n_tiles) with
      * tr a multiple of the packing-safe minimum (8 f32 / 16 bf16 / 32 int8),
      * ~1 MiB per input tile for the widest dtype,
      * n_tiles >= 2 whenever the data allows (v7x dual-TC sharding),
      * padded_rows a multiple of tr (inputs are zero-padded to this).
    """
    min_item = min(itemsizes)
    max_item = max(itemsizes)
    rows = pl.cdiv(total, _LANE)
    min_tr = max(8, 32 // min_item)                       # 8 f32 / 16 bf16 / 32 int8
    tr = max(min_tr, (1 << 20) // (_LANE * max_item))     # ~1 MiB widest-dtype tile
    tr = min(tr, 1024)
    if rows >= 2 * min_tr:
        # keep at least two grid steps so the "parallel" axis can shard (v7x)
        tr = min(tr, _round_up(pl.cdiv(rows, 2), min_tr))
    else:
        tr = _round_up(max(rows, 1), min_tr)
    tr = _round_up(tr, min_tr)
    padded_rows = _round_up(rows, tr)
    return tr, padded_rows, padded_rows // tr


def _to_tiles(x, padded_rows):
    """Flatten to 1D, zero-pad to padded_rows*_LANE, reshape lane-dense 2D."""
    flat = x.reshape(-1)
    pad = padded_rows * _LANE - flat.size
    if pad:
        flat = jnp.pad(flat, (0, pad))    # zeros: exact for the squared diff
    return flat.reshape(padded_rows, _LANE)


def _choose_dslab(d, plane_bytes):
    """Largest multiple-of-8 divisor of d with slab <= ~2 MiB; else full depth."""
    budget = 2 << 20
    if d * plane_bytes <= budget or d <= 8:
        return d
    max_td = max(8, budget // plane_bytes)
    best = None
    for td in range(8, min(d, max_td) + 1, 8):
        if d % td == 0:
            best = td
    return best if best is not None else d


# ---------------------------------------------------------------------------
# kernels
# ---------------------------------------------------------------------------
def _mse_partial_kernel(scales, *refs):
    """One (TR, LANE) tile: lane-vector partial of sum_k scales[k]*(head_k - t)^2.

    refs = (head_0, ..., head_{K-1}, target, out).  Heads/target stay in their
    native dtype into VMEM and are cast to f32 on the VPU.  scale_k*(d*d) is
    accumulated elementwise; the only cross-vreg reduction is a single sublane
    sum, stored as a dense (1, 1, LANE) lane vector.  `scales` are static
    floats with weight_k / n_elems already folded in.
    """
    k_heads = len(scales)
    head_refs = refs[:k_heads]
    tgt_ref = refs[k_heads]
    out_ref = refs[k_heads + 1]

    t = tgt_ref[...].astype(jnp.float32)
    d = head_refs[0][...].astype(jnp.float32) - t
    acc = jnp.float32(scales[0]) * (d * d)
    for k in range(1, k_heads):
        d = head_refs[k][...].astype(jnp.float32) - t
        acc = acc + jnp.float32(scales[k]) * (d * d)

    out_ref[...] = jnp.sum(acc, axis=0, keepdims=True)[None]     # (1, 1, LANE)


def _tv_partial_kernel(inv_dens, slab_ref, nxt_ref, out_ref):
    """TV partial for one (1, TD, H, W) depth-slab of head 0.

    `nxt_ref` holds the first plane of the NEXT slab (clamped to the last
    plane for the final slab, where its contribution is exactly zero), so the
    cross-slab D-difference needs no halo.  The static per-axis mean
    denominators are folded in; the scalar partial lands in lane 0 of a
    lane-dense (1, 1, 128) output block.
    """
    inv_d, inv_h, inv_w = inv_dens
    o = slab_ref[0].astype(jnp.float32)                  # (TD, H, W)
    nxt = nxt_ref[...].astype(jnp.float32)[0, 0]         # (H, W)

    tv_d = jnp.sum(jnp.abs(o[1:] - o[:-1])) + jnp.sum(jnp.abs(nxt - o[-1]))
    tv_h = jnp.sum(jnp.abs(o[:, 1:, :] - o[:, :-1, :]))
    tv_w = jnp.sum(jnp.abs(o[:, :, 1:] - o[:, :, :-1]))
    val = (jnp.float32(inv_d) * tv_d
           + jnp.float32(inv_h) * tv_h
           + jnp.float32(inv_w) * tv_w)

    lane = jax.lax.broadcasted_iota(jnp.int32, out_ref.shape, 2)
    out_ref[...] = jnp.where(lane == 0, val, jnp.float32(0.0))


# ---------------------------------------------------------------------------
# pallas_call wrappers
# ---------------------------------------------------------------------------
def _weighted_mse_sum(heads, target, scales):
    """sum_k scales[k] * sum((heads[k] - target)^2), tiled, padded, lane-dense."""
    for h in heads:
        if h.shape != target.shape:
            raise ValueError(f"head shape {h.shape} != target shape {target.shape}")

    itemsizes = [h.dtype.itemsize for h in heads] + [target.dtype.itemsize]
    total = int(target.size)
    tr, padded_rows, n_tiles = _plan_tiles(total, itemsizes)

    # Layout plumbing only; zero padding is exact for the squared difference.
    heads_2d = [_to_tiles(h, padded_rows) for h in heads]
    target_2d = _to_tiles(target, padded_rows)

    tile_spec = pl.BlockSpec((tr, _LANE), lambda s: (s, 0))
    kernel = functools.partial(_mse_partial_kernel,
                               tuple(float(s) for s in scales))

    # (K+1) inputs x 2 pipeline buffers; cap at 48 MiB so it never overshoots
    # v7x's 64 MiB physical VMEM even when tiles comfortably fit v5e/v6e.
    tile_bytes = tr * _LANE * max(itemsizes)
    vmem_bytes = int(min(48 << 20,
                         max(32 << 20,
                             2 * (len(heads) + 1) * tile_bytes + (2 << 20))))

    partials = pl.pallas_call(
        kernel,
        out_shape=jax.ShapeDtypeStruct((n_tiles, 1, _LANE), jnp.float32),
        grid_spec=pltpu.PrefetchScalarGridSpec(
            num_scalar_prefetch=0,
            grid=(n_tiles,),
            in_specs=[tile_spec] * (len(heads) + 1),       # K heads + target
            out_specs=pl.BlockSpec((1, 1, _LANE), lambda s: (s, 0, 0)),
        ),
        compiler_params=pltpu.CompilerParams(
            dimension_semantics=("parallel",),              # megacore-shardable
            vmem_limit_bytes=vmem_bytes,
        ),
    )(*heads_2d, target_2d)

    # Tiny dense final reduction over lane-vector partials (no strided gather).
    return jnp.sum(partials)


def _tv3d_loss(o0):
    """3D total-variation loss of head 0 (mean |forward diff| along D, H, W)."""
    N, C, D, H, W = o0.shape
    if min(D, H, W) < 2:
        raise ValueError("TV loss needs D, H, W >= 2 (PyTorch version would NaN).")
    nc = N * C
    o4 = o0.reshape(nc, D, H, W)

    td = _choose_dslab(D, H * W * o0.dtype.itemsize)
    n_dslabs = D // td
    inv_dens = (1.0 / (nc * (D - 1) * H * W),
                1.0 / (nc * D * (H - 1) * W),
                1.0 / (nc * D * H * (W - 1)))
    kernel = functools.partial(_tv_partial_kernel, inv_dens)

    partials = pl.pallas_call(
        kernel,
        out_shape=jax.ShapeDtypeStruct((nc * n_dslabs, 1, 128), jnp.float32),
        grid_spec=pltpu.PrefetchScalarGridSpec(
            num_scalar_prefetch=0,
            grid=(nc, n_dslabs),
            in_specs=[
                # current depth-slab
                pl.BlockSpec((1, td, H, W), lambda i, j: (i, j, 0, 0)),
                # first plane of the next slab (block size 1 along D =>
                # block index == plane index); clamped for the last slab
                pl.BlockSpec((1, 1, H, W),
                             lambda i, j: (i, jnp.minimum((j + 1) * td, D - 1),
                                           0, 0)),
            ],
            out_specs=pl.BlockSpec((1, 1, 128),
                                   lambda i, j: (i * n_dslabs + j, 0, 0)),
        ),
        compiler_params=pltpu.CompilerParams(
            dimension_semantics=("parallel", "arbitrary"),
            vmem_limit_bytes=32 * 1024 * 1024,
        ),
    )(o4, o4)

    return jnp.sum(partials)


def deep_supervision_loss(outputs, target,
                          weights=(1.0, 0.2, 0.1, 0.05),
                          tv_loss_weight=0.0):
    """JAX/Pallas equivalent of DeepSupervisionLoss.forward (criterion = MSE)."""
    if not isinstance(outputs, (tuple, list)):
        # Non-tuple branch of the PyTorch forward: plain criterion(outputs, target).
        return _weighted_mse_sum([outputs], target, [1.0 / target.size])

    K = len(outputs)
    if len(weights) < K:
        raise ValueError(f"need at least {K} weights, got {len(weights)}")

    n_elems = target.size
    scales = [float(weights[k]) / n_elems for k in range(K)]   # weight & mean folded
    loss = _weighted_mse_sum(list(outputs), target, scales)

    # TV branch is compiled only when statically enabled (matches PyTorch gate).
    if float(tv_loss_weight) > 0.0:
        loss = loss + jnp.float32(tv_loss_weight) * _tv3d_loss(outputs[0])
    return loss


# ---------------------------------------------------------------------------
# pure-JAX reference (matches the PyTorch forward with criterion=MSE)
# ---------------------------------------------------------------------------
def _reference_loss(outputs, target, weights, tv_loss_weight):
    tgt = target.astype(jnp.float32)
    total = 0.0
    for idx, o in enumerate(outputs):
        of = o.astype(jnp.float32)
        total = total + weights[idx] * jnp.mean((of - tgt) ** 2)
    if tv_loss_weight > 0.0:
        o0 = outputs[0].astype(jnp.float32)
        tv = (jnp.mean(jnp.abs(o0[:, :, 1:, :, :] - o0[:, :, :-1, :, :]))
              + jnp.mean(jnp.abs(o0[:, :, :, 1:, :] - o0[:, :, :, :-1, :]))
              + jnp.mean(jnp.abs(o0[:, :, :, :, 1:] - o0[:, :, :, :, :-1])))
        total = total + tv_loss_weight * tv
    return total


if __name__ == "__main__":
    key = jax.random.PRNGKey(0)
    N, C, D, H, W = 2, 4, 8, 8, 8
    K = 4  # number of deep-supervision heads

    keys = jax.random.split(key, K + 1)
    outputs = tuple(
        jax.random.normal(keys[i], (N, C, D, H, W), dtype=jnp.float32)
        for i in range(K)
    )
    target = jax.random.normal(keys[K], (N, C, D, H, W), dtype=jnp.float32)
    weights = (1.0, 0.2, 0.1, 0.05)

    # Tuple branch with TV term.
    loss = jax.block_until_ready(
        deep_supervision_loss(outputs, target, weights, tv_loss_weight=0.5))
    ref = _reference_loss(outputs, target, weights, 0.5)
    assert jnp.allclose(loss, ref, rtol=1e-5, atol=1e-5), (loss, ref)

    # Tuple branch, TV statically disabled (no TV kernel emitted at all).
    loss0 = jax.block_until_ready(
        deep_supervision_loss(outputs, target, weights, tv_loss_weight=0.0))
    ref0 = _reference_loss(outputs, target, weights, 0.0)
    assert jnp.allclose(loss0, ref0, rtol=1e-5, atol=1e-5), (loss0, ref0)

    # bf16 heads: no wrapper-side upcast; per-tile VPU cast, >=16-row tiles.
    outputs_bf16 = tuple(o.astype(jnp.bfloat16) for o in outputs)
    loss_bf = jax.block_until_ready(
        deep_supervision_loss(outputs_bf16, target, weights, tv_loss_weight=0.5))
    ref_bf = _reference_loss(outputs_bf16, target, weights, 0.5)
    assert jnp.allclose(loss_bf, ref_bf, rtol=1e-3, atol=1e-3), (loss_bf, ref_bf)

    # Awkward, non-dividing shape: exercises the exact zero-padding tile path.
    shp = (2, 3, 7, 9, 11)
    keys2 = jax.random.split(jax.random.PRNGKey(1), K + 1)
    outputs_odd = tuple(
        jax.random.normal(keys2[i], shp, dtype=jnp.float32) for i in range(K))
    target_odd = jax.random.normal(keys2[K], shp, dtype=jnp.float32)
    loss_odd = jax.block_until_ready(
        deep_supervision_loss(outputs_odd, target_odd, weights, tv_loss_weight=0.3))
    ref_odd = _reference_loss(outputs_odd, target_odd, weights, 0.3)
    assert jnp.allclose(loss_odd, ref_odd, rtol=1e-5, atol=1e-5), (loss_odd, ref_odd)

    # Non-tuple branch: plain criterion(outputs, target).
    single = jax.block_until_ready(deep_supervision_loss(outputs[0], target))
    assert jnp.allclose(single, jnp.mean((outputs[0] - target) ** 2),
                        rtol=1e-5, atol=1e-5), single

    print("KERNEL_OK")
</pallas_src>

<mosaic_0001>
module attributes {stable_mosaic.version = 11 : i64} {
  func.func @_mse_partial_kernel(%arg0: i32, %arg1: memref<8x512xf32, #tpu.memory_space<vmem>>, %arg2: memref<8x512xf32, #tpu.memory_space<vmem>>, %arg3: memref<8x512xf32, #tpu.memory_space<vmem>>, %arg4: memref<8x512xf32, #tpu.memory_space<vmem>>, %arg5: memref<8x512xf32, #tpu.memory_space<vmem>>, %arg6: memref<1x1x512xf32, #tpu.memory_space<vmem>>) attributes {dimension_semantics = [#tpu.dimension_semantics<parallel>], iteration_bounds = array<i64: 1>, scalar_prefetch = 0 : i64, scratch_operands = 0 : i64, tpu.core_type = #tpu.core_type<tc>, window_params = [{transform_indices = @transform_0, window_bounds = array<i64: 8, 512>}, {transform_indices = @transform_1, window_bounds = array<i64: 8, 512>}, {transform_indices = @transform_2, window_bounds = array<i64: 8, 512>}, {transform_indices = @transform_3, window_bounds = array<i64: 8, 512>}, {transform_indices = @transform_4, window_bounds = array<i64: 8, 512>}, {transform_indices = @transform_5, window_bounds = array<i64: 1, 1, 512>}]} {
    %c0 = arith.constant 0 : index
    %c0_0 = arith.constant 0 : index
    %0 = vector.load %arg5[%c0, %c0_0] : memref<8x512xf32, #tpu.memory_space<vmem>>, vector<8x512xf32>
    %c0_1 = arith.constant 0 : index
    %c0_2 = arith.constant 0 : index
    %1 = vector.load %arg1[%c0_1, %c0_2] : memref<8x512xf32, #tpu.memory_space<vmem>>, vector<8x512xf32>
    %2 = arith.subf %1, %0 : vector<8x512xf32>
    %3 = arith.mulf %2, %2 : vector<8x512xf32>
    %cst = arith.constant 2.44140625E-4 : f32
    %4 = vector.broadcast %cst : f32 to vector<8x512xf32>
    %5 = arith.mulf %4, %3 : vector<8x512xf32>
    %c0_3 = arith.constant 0 : index
    %c0_4 = arith.constant 0 : index
    %6 = vector.load %arg2[%c0_3, %c0_4] : memref<8x512xf32, #tpu.memory_space<vmem>>, vector<8x512xf32>
    %7 = arith.subf %6, %0 : vector<8x512xf32>
    %8 = arith.mulf %7, %7 : vector<8x512xf32>
    %cst_5 = arith.constant 4.88281257E-5 : f32
    %9 = vector.broadcast %cst_5 : f32 to vector<8x512xf32>
    %10 = arith.mulf %9, %8 : vector<8x512xf32>
    %11 = arith.addf %5, %10 : vector<8x512xf32>
    %c0_6 = arith.constant 0 : index
    %c0_7 = arith.constant 0 : index
    %12 = vector.load %arg3[%c0_6, %c0_7] : memref<8x512xf32, #tpu.memory_space<vmem>>, vector<8x512xf32>
    %13 = arith.subf %12, %0 : vector<8x512xf32>
    %14 = arith.mulf %13, %13 : vector<8x512xf32>
    %cst_8 = arith.constant 2.44140629E-5 : f32
    %15 = vector.broadcast %cst_8 : f32 to vector<8x512xf32>
    %16 = arith.mulf %15, %14 : vector<8x512xf32>
    %17 = arith.addf %11, %16 : vector<8x512xf32>
    %c0_9 = arith.constant 0 : index
    %c0_10 = arith.constant 0 : index
    %18 = vector.load %arg4[%c0_9, %c0_10] : memref<8x512xf32, #tpu.memory_space<vmem>>, vector<8x512xf32>
    %19 = arith.subf %18, %0 : vector<8x512xf32>
    %20 = arith.mulf %19, %19 : vector<8x512xf32>
    %cst_11 = arith.constant 1.22070314E-5 : f32
    %21 = vector.broadcast %cst_11 : f32 to vector<8x512xf32>
    %22 = arith.mulf %21, %20 : vector<8x512xf32>
    %23 = arith.addf %17, %22 : vector<8x512xf32>
    %cst_12 = arith.constant dense<0.000000e+00> : vector<512xf32>
    %24 = vector.multi_reduction <add>, %23, %cst_12 [0] : vector<8x512xf32> to vector<512xf32>
    %25 = vector.shape_cast %24 : vector<512xf32> to vector<1x512xf32>
    %26 = vector.shape_cast %25 : vector<1x512xf32> to vector<1x1x512xf32>
    %c0_13 = arith.constant 0 : index
    %c0_14 = arith.constant 0 : index
    %c0_15 = arith.constant 0 : index
    %27 = vector.load %arg6[%c0_13, %c0_14, %c0_15] : memref<1x1x512xf32, #tpu.memory_space<vmem>>, vector<1x1x512xf32>
    tpu.vector_store %arg6[%c0_13, %c0_14, %c0_15], %26 {strides = array<i32>} : memref<1x1x512xf32, #tpu.memory_space<vmem>>, vector<1x1x512xf32>,
    return
  }
  func.func @transform_0(%arg0: i32) -> (i32, i32) {
    %c0_i32 = arith.constant 0 : i32
    %c0_i32_0 = arith.constant 0 : i32
    return %arg0, %c0_i32 : i32, i32
  }
  func.func @transform_1(%arg0: i32) -> (i32, i32) {
    %c0_i32 = arith.constant 0 : i32
    %c0_i32_0 = arith.constant 0 : i32
    return %arg0, %c0_i32 : i32, i32
  }
  func.func @transform_2(%arg0: i32) -> (i32, i32) {
    %c0_i32 = arith.constant 0 : i32
    %c0_i32_0 = arith.constant 0 : i32
    return %arg0, %c0_i32 : i32, i32
  }
  func.func @transform_3(%arg0: i32) -> (i32, i32) {
    %c0_i32 = arith.constant 0 : i32
    %c0_i32_0 = arith.constant 0 : i32
    return %arg0, %c0_i32 : i32, i32
  }
  func.func @transform_4(%arg0: i32) -> (i32, i32) {
    %c0_i32 = arith.constant 0 : i32
    %c0_i32_0 = arith.constant 0 : i32
    return %arg0, %c0_i32 : i32, i32
  }
  func.func @transform_5(%arg0: i32) -> (i32, i32, i32) {
    %c0_i32 = arith.constant 0 : i32
    %c0_i32_0 = arith.constant 0 : i32
    %c0_i32_1 = arith.constant 0 : i32
    return %arg0, %c0_i32, %c0_i32_0 : i32, i32, i32
  }
}

</mosaic_0001>

<llo_original>
// kernel: tpu_custom_call.1
$region0: #{tpu_custom_call.1}
  #allocation0 [shape = 'u32[]', space=smem, size = 0x4, offset = 0x4, fixed_abs, tag = 'smem constant byte address 0x4 - core index']
  #allocation1 [shape = 'u32[144,128]{1,0:T(1,128)}', space=vmem, size = 0x12000, scoped, tag = 'internal scratch']
  %s0 = inlined_call_operand.hbm [shape: f32[8,512], index: 0, kind: input, shape index: {}]
  %s1 = inlined_call_operand.hbm [shape: f32[8,512], index: 1, kind: input, shape index: {}]
  %s2 = inlined_call_operand.hbm [shape: f32[8,512], index: 2, kind: input, shape index: {}]
  %s3 = inlined_call_operand.hbm [shape: f32[8,512], index: 3, kind: input, shape index: {}]
  %s4 = inlined_call_operand.hbm [shape: f32[8,512], index: 4, kind: input, shape index: {}]
  %s5 = inlined_call_operand.hbm [shape: f32[1,1,512], index: 5, kind: output, shape index: {}]
  %s6 = sld [smem:[#allocation0]]
  $region50: #{tpu_custom_call.1} parent=0
    _
  %s8 = ssub.s32 1, %s6
  %s9 = scalar_select 0, %s8, %s6
  $region1: #{tpu_custom_call.1} parent=0
    #allocation2 [shape = 'u8[16384]{0}', space=vmem, size = 0x4000, scoped, tag = 'input window, operand 0, single buffered']
    #allocation3 [shape = 's32[1]{0}', space=sflag, size = 0x4, scoped, tag = 'scoped memory for tpu_custom_call.1']
    #allocation4 [shape = 's32[1]{0}', space=sflag, size = 0x4, scoped, tag = 'scoped memory for tpu_custom_call.1']
    #allocation5 [shape = 'u8[16384]{0}', space=vmem, size = 0x4000, scoped, tag = 'input window, operand 1, single buffered']
    #allocation6 [shape = 's32[1]{0}', space=sflag, size = 0x4, scoped, tag = 'scoped memory for tpu_custom_call.1']
    #allocation7 [shape = 'u8[16384]{0}', space=vmem, size = 0x4000, scoped, tag = 'input window, operand 2, single buffered']
    #allocation8 [shape = 'u8[16384]{0}', space=vmem, size = 0x4000, scoped, tag = 'input window, operand 3, single buffered']
    #allocation9 [shape = 's32[1]{0}', space=sflag, size = 0x4, scoped, tag = 'scoped memory for tpu_custom_call.1']
    #allocation10 [shape = 'u8[16384]{0}', space=vmem, size = 0x4000, scoped, tag = 'input window, operand 4, single buffered']
    #allocation11 [shape = 'u8[2048]{0}', space=vmem, size = 0x800, scoped, tag = 'output window, operand 0, single buffered']
    %10 = vsyncpa [#allocation3], 0
    %11 = vsyncpa [#allocation6], 0
    %12 = vsyncpa [#allocation9], 0
    %13 = vsyncpa [#allocation4], 0
    // Predicated region
    $region2: #{tpu_custom_call.1} parent=1 // pred_check
      _
    $region3: #{tpu_custom_call.1} parent=1 // pred_check_branch
      %15 = sbr.rel (0) target = $region5
    $region4: #{tpu_custom_call.1} parent=1 // pred_region
      %s17 = ssub.s32 512, 512
      %18 = vsyncadd [#allocation3], %s17
      %s20 = sshll.u32 [#allocation2], 4
      %s21 = int_to_ptr.vmem [resolvable:$true] %s20
      %23 = dma.hbm_to_vmem [thread:$0]  %s0, 512, %s21, [#allocation3]
    $region5: #{tpu_custom_call.1} parent=1 // pred_fallthru
      _
    // Predicated region
    $region6: #{tpu_custom_call.1} parent=1 // pred_check
      _
    $region7: #{tpu_custom_call.1} parent=1 // pred_check_branch
      %25 = sbr.rel (0) target = $region9
    $region8: #{tpu_custom_call.1} parent=1 // pred_region
      %s27 = ssub.s32 512, 512
      %28 = vsyncadd [#allocation6], %s27
      %s30 = sshll.u32 [#allocation5], 4
      %s31 = int_to_ptr.vmem [resolvable:$true] %s30
      %33 = dma.hbm_to_vmem [thread:$0]  %s1, 512, %s31, [#allocation6]
    $region9: #{tpu_custom_call.1} parent=1 // pred_fallthru
      _
    // Predicated region
    $region10: #{tpu_custom_call.1} parent=1 // pred_check
      _
    $region11: #{tpu_custom_call.1} parent=1 // pred_check_branch
      %35 = sbr.rel (0) target = $region13
    $region12: #{tpu_custom_call.1} parent=1 // pred_region
      %s37 = ssub.s32 512, 512
      %38 = vsyncadd [#allocation6], %s37
      %s40 = sshll.u32 [#allocation7], 4
      %s41 = int_to_ptr.vmem [resolvable:$true] %s40
      %43 = dma.hbm_to_vmem [thread:$0]  %s2, 512, %s41, [#allocation6]
    $region13: #{tpu_custom_call.1} parent=1 // pred_fallthru
      _
    // Predicated region
    $region14: #{tpu_custom_call.1} parent=1 // pred_check
      _
    $region15: #{tpu_custom_call.1} parent=1 // pred_check_branch
      %45 = sbr.rel (0) target = $region17
    $region16: #{tpu_custom_call.1} parent=1 // pred_region
      %s47 = ssub.s32 512, 512
      %48 = vsyncadd [#allocation9], %s47
      %s50 = sshll.u32 [#allocation8], 4
      %s51 = int_to_ptr.vmem [resolvable:$true] %s50
      %53 = dma.hbm_to_vmem [thread:$0]  %s3, 512, %s51, [#allocation9]
    $region17: #{tpu_custom_call.1} parent=1 // pred_fallthru
      _
    // Predicated region
    $region18: #{tpu_custom_call.1} parent=1 // pred_check
      _
    $region19: #{tpu_custom_call.1} parent=1 // pred_check_branch
      %55 = sbr.rel (0) target = $region21
    $region20: #{tpu_custom_call.1} parent=1 // pred_region
      %s57 = ssub.s32 512, 512
      %58 = vsyncadd [#allocation9], %s57
      %s60 = sshll.u32 [#allocation10], 4
      %s61 = int_to_ptr.vmem [resolvable:$true] %s60
      %63 = dma.hbm_to_vmem [thread:$0]  %s4, 512, %s61, [#allocation9]
    $region21: #{tpu_custom_call.1} parent=1 // pred_fallthru
      _
    // Predicated region
    $region22: #{tpu_custom_call.1} parent=1 // pred_check
      _
    $region23: #{tpu_custom_call.1} parent=1 // pred_check_branch
      %65 = sbr.rel (0) target = $region25
    $region24: #{tpu_custom_call.1} parent=1 // pred_region
      %66 = dma.done [#allocation3], 512
    $region25: #{tpu_custom_call.1} parent=1 // pred_fallthru
      _
    // Predicated region
    $region26: #{tpu_custom_call.1} parent=1 // pred_check
      _
    $region27: #{tpu_custom_call.1} parent=1 // pred_check_branch
      %68 = sbr.rel (0) target = $region29
    $region28: #{tpu_custom_call.1} parent=1 // pred_region
      %69 = dma.done [#allocation6], 512
    $region29: #{tpu_custom_call.1} parent=1 // pred_fallthru
      _
    // Predicated region
    $region30: #{tpu_custom_call.1} parent=1 // pred_check
      _
    $region31: #{tpu_custom_call.1} parent=1 // pred_check_branch
      %71 = sbr.rel (0) target = $region33
    $region32: #{tpu_custom_call.1} parent=1 // pred_region
      %72 = dma.done [#allocation6], 512
    $region33: #{tpu_custom_call.1} parent=1 // pred_fallthru
      _
    // Predicated region
    $region34: #{tpu_custom_call.1} parent=1 // pred_check
      _
    $region35: #{tpu_custom_call.1} parent=1 // pred_check_branch
      %74 = sbr.rel (0) target = $region37
    $region36: #{tpu_custom_call.1} parent=1 // pred_region
      %75 = dma.done [#allocation9], 512
    $region37: #{tpu_custom_call.1} parent=1 // pred_fallthru
      _
    // Predicated region
    $region38: #{tpu_custom_call.1} parent=1 // pred_check
      _
    $region39: #{tpu_custom_call.1} parent=1 // pred_check_branch
      %77 = sbr.rel (0) target = $region41
    $region40: #{tpu_custom_call.1} parent=1 // pred_region
      %78 = dma.done [#allocation9], 512
    $region41: #{tpu_custom_call.1} parent=1 // pred_fallthru
      _
    %v79 = vld [vmem:[#allocation10] sm:$0xff]
    %v80 = vld [vmem:[#allocation10 + $0x8] sm:$0xff]
    %v81 = vld [vmem:[#allocation10 + $0x10] sm:$0xff]
    %v82 = vld [vmem:[#allocation10 + $0x18] sm:$0xff]
    %v83 = vld [vmem:[#allocation2] sm:$0xff]
    %v84 = vld [vmem:[#allocation2 + $0x8] sm:$0xff]
    %v85 = vld [vmem:[#allocation2 + $0x10] sm:$0xff]
    %v86 = vld [vmem:[#allocation2 + $0x18] sm:$0xff]
    %v87 = vsub.f32 %v83, %v79
    %v88 = vsub.f32 %v84, %v80
    %v89 = vsub.f32 %v85, %v81
    %v90 = vsub.f32 %v86, %v82
    %v91 = vmul.f32 %v87, %v87
    %v92 = vmul.f32 %v88, %v88
    %v93 = vmul.f32 %v89, %v89
    %v94 = vmul.f32 %v90, %v90
    %v95 = vmul.f32 %v91, 0.00024414063
    %v96 = vmul.f32 %v92, 0.00024414063
    %v97 = vmul.f32 %v93, 0.00024414063
    %v98 = vmul.f32 %v94, 0.00024414063
    %v99 = vld [vmem:[#allocation5] sm:$0xff]
    %v100 = vld [vmem:[#allocation5 + $0x8] sm:$0xff]
    %v101 = vld [vmem:[#allocation5 + $0x10] sm:$0xff]
    %v102 = vld [vmem:[#allocation5 + $0x18] sm:$0xff]
    %v103 = vsub.f32 %v99, %v79
    %v104 = vsub.f32 %v100, %v80
    %v105 = vsub.f32 %v101, %v81
    %v106 = vsub.f32 %v102, %v82
    %v107 = vmul.f32 %v103, %v103
    %v108 = vmul.f32 %v104, %v104
    %v109 = vmul.f32 %v105, %v105
    %v110 = vmul.f32 %v106, %v106
    %v111 = vmul.f32 %v107, 4.8828126e-05
    %v112 = vmul.f32 %v108, 4.8828126e-05
    %v113 = vmul.f32 %v109, 4.8828126e-05
    %v114 = vmul.f32 %v110, 4.8828126e-05
    %v115 = vadd.f32 %v95, %v111
    %v116 = vadd.f32 %v96, %v112
    %v117 = vadd.f32 %v97, %v113
    %v118 = vadd.f32 %v98, %v114
    %v119 = vld [vmem:[#allocation7] sm:$0xff]
    %v120 = vld [vmem:[#allocation7 + $0x8] sm:$0xff]
    %v121 = vld [vmem:[#allocation7 + $0x10] sm:$0xff]
    %v122 = vld [vmem:[#allocation7 + $0x18] sm:$0xff]
    %v123 = vsub.f32 %v119, %v79
    %v124 = vsub.f32 %v120, %v80
    %v125 = vsub.f32 %v121, %v81
    %v126 = vsub.f32 %v122, %v82
    %v127 = vmul.f32 %v123, %v123
    %v128 = vmul.f32 %v124, %v124
    %v129 = vmul.f32 %v125, %v125
    %v130 = vmul.f32 %v126, %v126
    %v131 = vmul.f32 %v127, 2.4414063e-05
    %v132 = vmul.f32 %v128, 2.4414063e-05
    %v133 = vmul.f32 %v129, 2.4414063e-05
    %v134 = vmul.f32 %v130, 2.4414063e-05
    %v135 = vadd.f32 %v115, %v131
    %v136 = vadd.f32 %v116, %v132
    %v137 = vadd.f32 %v117, %v133
    %v138 = vadd.f32 %v118, %v134
    %v139 = vld [vmem:[#allocation8] sm:$0xff]
    %v140 = vld [vmem:[#allocation8 + $0x8] sm:$0xff]
    %v141 = vld [vmem:[#allocation8 + $0x10] sm:$0xff]
    %v142 = vld [vmem:[#allocation8 + $0x18] sm:$0xff]
    %v143 = vsub.f32 %v139, %v79
    %v144 = vsub.f32 %v140, %v80
    %v145 = vsub.f32 %v141, %v81
    %v146 = vsub.f32 %v142, %v82
    %v147 = vmul.f32 %v143, %v143
    %v148 = vmul.f32 %v144, %v144
    %v149 = vmul.f32 %v145, %v145
    %v150 = vmul.f32 %v146, %v146
    %v151 = vmul.f32 %v147, 1.2207031e-05
    %v152 = vmul.f32 %v148, 1.2207031e-05
    %v153 = vmul.f32 %v149, 1.2207031e-05
    %v154 = vmul.f32 %v150, 1.2207031e-05
    %v155 = vadd.f32 %v135, %v151
    %v156 = vadd.f32 %v136, %v152
    %v157 = vadd.f32 %v137, %v153
    %v158 = vadd.f32 %v138, %v154
    %v159 = vrot.slane %v155, 4
    %v160 = vadd.f32 %v155, %v159
    %v161 = vrot.slane %v160, 2
    %v162 = vadd.f32 %v160, %v161
    %v163 = vrot.slane %v162, 1
    %v164 = vadd.f32 %v162, %v163
    %v165 = vrot.slane %v156, 4
    %v166 = vadd.f32 %v156, %v165
    %v167 = vrot.slane %v166, 2
    %v168 = vadd.f32 %v166, %v167
    %v169 = vrot.slane %v168, 1
    %v170 = vadd.f32 %v168, %v169
    %v171 = vrot.slane %v157, 4
    %v172 = vadd.f32 %v157, %v171
    %v173 = vrot.slane %v172, 2
    %v174 = vadd.f32 %v172, %v173
    %v175 = vrot.slane %v174, 1
    %v176 = vadd.f32 %v174, %v175
    %v177 = vrot.slane %v158, 4
    %v178 = vadd.f32 %v158, %v177
    %v179 = vrot.slane %v178, 2
    %v180 = vadd.f32 %v178, %v179
    %v181 = vrot.slane %v180, 1
    %v182 = vadd.f32 %v180, %v181
    %v187 = vcombine.low %v164, %v170
    %v188 = vcombine.low %v176, %v182
    %v190 = vunpack.c.l.s4 1966171168
    %v191 = vunpack.c.0.s8 %v190
    %v192 = vlaneseq
    %v193 = vshrl.u32 %v192, 7
    %v194 = vsub.s32 %v191, %v193
    %v195 = vrot.slane %v187, %v194
    %v197 = vunpack.c.l.s4 1966171168
    %v198 = vunpack.c.0.s8 %v197
    %v199 = vlaneseq
    %v200 = vshrl.u32 %v199, 7
    %v201 = vsub.s32 %v198, %v200
    %v202 = vrot.slane %v188, %v201
    %v203 = vcombine.low %v195, %v202
    %v205 = vunpack.c.l.s4 1966171168
    %v206 = vunpack.c.0.s8 %v205
    %v207 = vlaneseq
    %v208 = vshrl.u32 %v207, 7
    %v209 = vsub.s32 %v206, %v208
    %v210 = vrot.slane %v203, %v209
    %v212 = vlaneseq
    %vm213 = vcmp.ge.s32.totalorder %v212, 0
    %vm214 = vcmp.lt.s32.totalorder %v212, 512
    %vm215 = vmand %vm213, %vm214
    %216 = vst.msk [vmem:[#allocation11] sm:$0xf] %vm215, %v210
    // Predicated region
    $region42: #{tpu_custom_call.1} parent=1 // pred_check
      _
    $region43: #{tpu_custom_call.1} parent=1 // pred_check_branch
      %218 = sbr.rel (0) target = $region45
    $region44: #{tpu_custom_call.1} parent=1 // pred_region
      %s220 = ssub.s32 64, 64
      %221 = vsyncadd [#allocation4], %s220
      %s223 = sshll.u32 [#allocation11], 4
      %s224 = int_to_ptr.vmem [resolvable:$true] %s223
      %226 = dma.vmem_to_hbm [thread:$0]  %s224, 64, %s5, [#allocation4]
    $region45: #{tpu_custom_call.1} parent=1 // pred_fallthru
      _
    // Predicated region
    $region46: #{tpu_custom_call.1} parent=1 // pred_check
      _
    $region47: #{tpu_custom_call.1} parent=1 // pred_check_branch
      %228 = sbr.rel (0) target = $region49
    $region48: #{tpu_custom_call.1} parent=1 // pred_region
      %229 = dma.done [#allocation4], 64
    $region49: #{tpu_custom_call.1} parent=1 // pred_fallthru
      _
    %230 = vsyncpa [#allocation3], 1
    %231 = vsyncpa [#allocation6], 1
    %232 = vsyncpa [#allocation9], 1
    %233 = vsyncpa [#allocation4], 1

</llo_original>
